<compile_context>
chip_gen: v7x
topology: tpu7x:2x2x1
jax: 0.10.0
libtpu: 0.0.40
codegen_flags: <defaults>
</compile_context>

<pallas_src>
import jax
import jax.numpy as jnp
from jax.experimental import pallas as pl
from jax.experimental.pallas import tpu as pltpu

_LANE = 128
_MIB = 1 << 20


def _prod_kernel(x_ref, orig_ref, o_ref):
    # Elementwise product of the current tile (hot path, VPU-only; HBM-bound).
    o_ref[...] = x_ref[...] * orig_ref[...]


def _sublane_packing(dtype):
    # Rows per packed vreg tile: 8 for 32-bit, 16 for 16-bit, 32 for 8-bit.
    itemsize = jnp.dtype(dtype).itemsize
    return max(8, 32 // max(itemsize, 1))


def _tpu_generation():
    """Best-effort TPU generation from device_kind; None if not recognizable."""
    try:
        kind = jax.devices()[0].device_kind.lower()
    except Exception:
        return None
    if "v7" in kind or "tpu7" in kind:
        return 7
    if "v6" in kind:
        return 6
    if "v5" in kind:
        return 5
    if "v4" in kind:
        return 4
    return None


def _gen_defaults(gen):
    """Per-generation (target_tile_bytes, small_fallback_bytes, vmem_cap_bytes)."""
    if gen == 7:
        # 64 MiB physical VMEM, ~3.2 TB/s HBM: 6 MiB tiles -> 36 MiB live, cap 48 MiB.
        return 6 * _MIB, 4 * _MIB, 48 * _MIB
    if gen == 6:
        # 128 MiB VMEM, ~1.4 TB/s HBM: 8 MiB tiles -> 48 MiB live, cap 64 MiB.
        return 8 * _MIB, 2 * _MIB, 64 * _MIB
    if gen is not None and gen <= 5:
        # ~0.8 TB/s HBM: per-step overhead <5% already at 4 MiB; keep VMEM modest.
        return 4 * _MIB, 1 * _MIB, 64 * _MIB
    # Unknown generation: be conservative (could be a 64 MiB-VMEM part).
    return 4 * _MIB, 2 * _MIB, 48 * _MIB


def prod_layer(x, x_orig, *, target_tile_bytes=None, small_fallback_bytes=None,
               donate_x=False):
    """Computes x * x_orig (ProdLayer forward) via a Pallas TPU kernel.

    target_tile_bytes / small_fallback_bytes default to generation-aware values.
    donate_x=True aliases the output onto x's buffer (only safe if the caller
    does not read x afterwards, which is the usual SequentialEx dataflow).
    """
    assert x.shape == x_orig.shape, "x and x.orig must have the same shape"
    assert x.dtype == x_orig.dtype, "x and x.orig must have the same dtype"

    gen = _tpu_generation()
    gen_tile, gen_fallback, vmem_cap = _gen_defaults(gen)
    if target_tile_bytes is None:
        target_tile_bytes = gen_tile
    if small_fallback_bytes is None:
        small_fallback_bytes = gen_fallback

    orig_shape = x.shape
    total = x.size
    itemsize = jnp.dtype(x.dtype).itemsize

    # Tiny tensors (custom-call overhead dominates and XLA can fuse the multiply
    # into neighbors) and non-lane-aligned totals (padding would ~2x HBM traffic)
    # take the plain XLA elementwise path.
    if total == 0 or total % _LANE != 0 or total * itemsize < small_fallback_bytes:
        return x * x_orig

    rows = total // _LANE
    xf = x.reshape(rows, _LANE)        # contiguous reshape: no copy (row-major layout)
    of = x_orig.reshape(rows, _LANE)   # contiguous reshape: no copy

    # Dtype-aware tile: ~target_tile_bytes per input block, rounded to the
    # packed sublane granularity, never larger than the (rounded-up) row count.
    packing = _sublane_packing(x.dtype)
    tile_rows = (target_tile_bytes // (_LANE * itemsize)) // packing * packing
    tile_rows = max(packing, tile_rows)
    rows_ceil = ((rows + packing - 1) // packing) * packing
    tile_rows = min(tile_rows, rows_ceil)

    grid = pl.cdiv(rows, tile_rows)    # ragged tail handled by edge-block masking

    # VMEM limit sized from the real live footprint: 3 arrays x 2 pipeline
    # buffers x one tile, plus margin, capped per generation.
    tile_bytes = tile_rows * _LANE * itemsize
    live_bytes = 3 * 2 * tile_bytes
    vmem_limit = max(32 * _MIB, min(vmem_cap, live_bytes + 4 * _MIB))

    # v7x has 2 TensorCores: CORE_PARALLEL shards the 1-D stream across both.
    # Plain "parallel" elsewhere (single TC on v5e/v6e; no-op either way).
    if gen == 7 and hasattr(pltpu, "CORE_PARALLEL") and grid % 2 == 0:
        dim_sem = (pltpu.CORE_PARALLEL,)
    else:
        dim_sem = ("parallel",)

    # Accurate cost hint so XLA can schedule/overlap around the custom call.
    cost = pl.CostEstimate(flops=total, transcendentals=0,
                           bytes_accessed=3 * total * itemsize)

    out2d = pl.pallas_call(
        _prod_kernel,
        out_shape=jax.ShapeDtypeStruct((rows, _LANE), x.dtype),
        grid_spec=pltpu.PrefetchScalarGridSpec(
            num_scalar_prefetch=0,
            grid=(grid,),
            in_specs=[
                pl.BlockSpec((tile_rows, _LANE), lambda i: (i, 0)),
                pl.BlockSpec((tile_rows, _LANE), lambda i: (i, 0)),
            ],
            out_specs=pl.BlockSpec((tile_rows, _LANE), lambda i: (i, 0)),
        ),
        compiler_params=pltpu.CompilerParams(
            dimension_semantics=dim_sem,
            vmem_limit_bytes=vmem_limit,
        ),
        cost_estimate=cost,
        input_output_aliases=({0: 0} if donate_x else {}),
    )(xf, of)

    return out2d.reshape(orig_shape)


if __name__ == "__main__":
    key = jax.random.PRNGKey(0)
    k1, k2, k3, k4 = jax.random.split(key, 4)

    # Small NCHW input matching the module's conv-style usage.
    x = jax.random.normal(k1, (2, 4, 16, 16), dtype=jnp.float32)
    x_orig = jax.random.normal(k2, (2, 4, 16, 16), dtype=jnp.float32)
    ref = x * x_orig

    # 1) Default path: tiny tensor -> XLA fallback (kernel launch not worth it).
    out_default = jax.block_until_ready(prod_layer(x, x_orig))
    assert out_default.shape == ref.shape and out_default.dtype == ref.dtype
    assert jnp.allclose(out_default, ref, atol=1e-6, rtol=1e-6)

    # 2) Forced Pallas path on the same small shape with the generation-aware
    #    default tile size (tile clamps to the full row count, single grid step).
    out_kernel = jax.block_until_ready(prod_layer(x, x_orig, small_fallback_bytes=0))
    assert out_kernel.shape == ref.shape and out_kernel.dtype == ref.dtype
    assert jnp.allclose(out_kernel, ref, atol=1e-6, rtol=1e-6)

    # 3) bf16 with a row count that does not divide the tile: exercises the
    #    cdiv grid + masked edge block and the 16-row sublane packing.
    xb = jax.random.normal(k3, (2, 4, 16, 20), dtype=jnp.bfloat16)
    ob = jax.random.normal(k4, (2, 4, 16, 20), dtype=jnp.bfloat16)
    out_b = jax.block_until_ready(
        prod_layer(xb, ob, small_fallback_bytes=0,
                   target_tile_bytes=16 * _LANE * 2)  # tiny tile -> 2-step grid, masked tail
    )
    ref_b = xb * ob
    assert out_b.shape == ref_b.shape and out_b.dtype == ref_b.dtype
    assert jnp.allclose(out_b.astype(jnp.float32), ref_b.astype(jnp.float32),
                        atol=1e-2, rtol=1e-2)

    print("KERNEL_OK")
</pallas_src>

<mosaic_0001>
module attributes {stable_mosaic.version = 11 : i64} {
  func.func @_prod_kernel(%arg0: i32, %arg1: memref<16x128xf32, #tpu.memory_space<vmem>>, %arg2: memref<16x128xf32, #tpu.memory_space<vmem>>, %arg3: memref<16x128xf32, #tpu.memory_space<vmem>>) attributes {dimension_semantics = [#tpu.dimension_semantics<parallel>], iteration_bounds = array<i64: 1>, scalar_prefetch = 0 : i64, scratch_operands = 0 : i64, tpu.core_type = #tpu.core_type<tc>, window_params = [{transform_indices = @transform_0, window_bounds = array<i64: 16, 128>}, {transform_indices = @transform_1, window_bounds = array<i64: 16, 128>}, {transform_indices = @transform_2, window_bounds = array<i64: 16, 128>}]} {
    %c0 = arith.constant 0 : index
    %c0_0 = arith.constant 0 : index
    %0 = vector.load %arg1[%c0, %c0_0] : memref<16x128xf32, #tpu.memory_space<vmem>>, vector<16x128xf32>
    %c0_1 = arith.constant 0 : index
    %c0_2 = arith.constant 0 : index
    %1 = vector.load %arg2[%c0_1, %c0_2] : memref<16x128xf32, #tpu.memory_space<vmem>>, vector<16x128xf32>
    %2 = arith.mulf %0, %1 : vector<16x128xf32>
    %c0_3 = arith.constant 0 : index
    %c0_4 = arith.constant 0 : index
    %3 = vector.load %arg3[%c0_3, %c0_4] : memref<16x128xf32, #tpu.memory_space<vmem>>, vector<16x128xf32>
    tpu.vector_store %arg3[%c0_3, %c0_4], %2 {strides = array<i32>} : memref<16x128xf32, #tpu.memory_space<vmem>>, vector<16x128xf32>,
    return
  }
  func.func @transform_0(%arg0: i32) -> (i32, i32) {
    %c0_i32 = arith.constant 0 : i32
    %c0_i32_0 = arith.constant 0 : i32
    return %arg0, %c0_i32 : i32, i32
  }
  func.func @transform_1(%arg0: i32) -> (i32, i32) {
    %c0_i32 = arith.constant 0 : i32
    %c0_i32_0 = arith.constant 0 : i32
    return %arg0, %c0_i32 : i32, i32
  }
  func.func @transform_2(%arg0: i32) -> (i32, i32) {
    %c0_i32 = arith.constant 0 : i32
    %c0_i32_0 = arith.constant 0 : i32
    return %arg0, %c0_i32 : i32, i32
  }
}

</mosaic_0001>

<llo_original>
// kernel: tpu_custom_call.1
$region0: #{tpu_custom_call.1}
  #allocation0 [shape = 'u32[]', space=smem, size = 0x4, offset = 0x4, fixed_abs, tag = 'smem constant byte address 0x4 - core index']
  #allocation1 [shape = 'u32[144,128]{1,0:T(1,128)}', space=vmem, size = 0x12000, scoped, tag = 'internal scratch']
  %s0 = inlined_call_operand.hbm [shape: f32[16,128], index: 0, kind: input, shape index: {}]
  %s1 = inlined_call_operand.hbm [shape: f32[16,128], index: 1, kind: input, shape index: {}]
  %s2 = inlined_call_operand.hbm [shape: f32[16,128], index: 2, kind: output, shape index: {}]
  %s3 = sld [smem:[#allocation0]]
  $region26: #{tpu_custom_call.1} parent=0
    _
  %s5 = ssub.s32 1, %s3
  %s6 = scalar_select 0, %s5, %s3
  $region1: #{tpu_custom_call.1} parent=0
    #allocation2 [shape = 'u8[8192]{0}', space=vmem, size = 0x2000, scoped, tag = 'input window, operand 0, single buffered']
    #allocation3 [shape = 's32[1]{0}', space=sflag, size = 0x4, scoped, tag = 'scoped memory for tpu_custom_call.1']
    #allocation4 [shape = 's32[1]{0}', space=sflag, size = 0x4, scoped, tag = 'scoped memory for tpu_custom_call.1']
    #allocation5 [shape = 'u8[8192]{0}', space=vmem, size = 0x2000, scoped, tag = 'input window, operand 1, single buffered']
    #allocation6 [shape = 's32[1]{0}', space=sflag, size = 0x4, scoped, tag = 'scoped memory for tpu_custom_call.1']
    #allocation7 [shape = 'u8[8192]{0}', space=vmem, size = 0x2000, scoped, tag = 'output window, operand 0, single buffered']
    %7 = vsyncpa [#allocation3], 0
    %8 = vsyncpa [#allocation6], 0
    %9 = vsyncpa [#allocation4], 0
    // Predicated region
    $region2: #{tpu_custom_call.1} parent=1 // pred_check
      _
    $region3: #{tpu_custom_call.1} parent=1 // pred_check_branch
      %11 = sbr.rel (0) target = $region5
    $region4: #{tpu_custom_call.1} parent=1 // pred_region
      %s13 = ssub.s32 256, 256
      %14 = vsyncadd [#allocation3], %s13
      %s15 = sshll.u32 [#allocation2], 4
      %s16 = int_to_ptr.vmem [resolvable:$true] %s15
      %21 = dma.hbm_to_vmem [thread:$0]  %s0, 256, %s16, [#allocation3], 128, 128, 8
    $region5: #{tpu_custom_call.1} parent=1 // pred_fallthru
      _
    // Predicated region
    $region6: #{tpu_custom_call.1} parent=1 // pred_check
      _
    $region7: #{tpu_custom_call.1} parent=1 // pred_check_branch
      %23 = sbr.rel (0) target = $region9
    $region8: #{tpu_custom_call.1} parent=1 // pred_region
      %s25 = ssub.s32 256, 256
      %26 = vsyncadd [#allocation6], %s25
      %s27 = sshll.u32 [#allocation5], 4
      %s28 = int_to_ptr.vmem [resolvable:$true] %s27
      %33 = dma.hbm_to_vmem [thread:$0]  %s1, 256, %s28, [#allocation6], 128, 128, 8
    $region9: #{tpu_custom_call.1} parent=1 // pred_fallthru
      _
    // Predicated region
    $region10: #{tpu_custom_call.1} parent=1 // pred_check
      _
    $region11: #{tpu_custom_call.1} parent=1 // pred_check_branch
      %35 = sbr.rel (0) target = $region13
    $region12: #{tpu_custom_call.1} parent=1 // pred_region
      %36 = dma.done [#allocation3], 256
    $region13: #{tpu_custom_call.1} parent=1 // pred_fallthru
      _
    // Predicated region
    $region14: #{tpu_custom_call.1} parent=1 // pred_check
      _
    $region15: #{tpu_custom_call.1} parent=1 // pred_check_branch
      %38 = sbr.rel (0) target = $region17
    $region16: #{tpu_custom_call.1} parent=1 // pred_region
      %39 = dma.done [#allocation6], 256
    $region17: #{tpu_custom_call.1} parent=1 // pred_fallthru
      _
    %v40 = vld [vmem:[#allocation2] sm:$0xff]
    %v41 = vld [vmem:[#allocation2 + $0x8] sm:$0xff]
    %v42 = vld [vmem:[#allocation5] sm:$0xff]
    %v43 = vld [vmem:[#allocation5 + $0x8] sm:$0xff]
    %v44 = vmul.f32 %v40, %v42
    %v45 = vmul.f32 %v41, %v43
    %46 = vst [vmem:[#allocation7] sm:$0xff] %v44
    %47 = vst [vmem:[#allocation7 + $0x8] sm:$0xff] %v45
    // Predicated region
    $region18: #{tpu_custom_call.1} parent=1 // pred_check
      _
    $region19: #{tpu_custom_call.1} parent=1 // pred_check_branch
      %49 = sbr.rel (0) target = $region21
    $region20: #{tpu_custom_call.1} parent=1 // pred_region
      %s51 = ssub.s32 256, 256
      %52 = vsyncadd [#allocation4], %s51
      %s53 = sshll.u32 [#allocation7], 4
      %s54 = int_to_ptr.vmem [resolvable:$true] %s53
      %59 = dma.vmem_to_hbm [thread:$0]  %s54, 256, %s2, [#allocation4], 128, 128, 8
    $region21: #{tpu_custom_call.1} parent=1 // pred_fallthru
      _
    // Predicated region
    $region22: #{tpu_custom_call.1} parent=1 // pred_check
      _
    $region23: #{tpu_custom_call.1} parent=1 // pred_check_branch
      %61 = sbr.rel (0) target = $region25
    $region24: #{tpu_custom_call.1} parent=1 // pred_region
      %62 = dma.done [#allocation4], 256
    $region25: #{tpu_custom_call.1} parent=1 // pred_fallthru
      _
    %63 = vsyncpa [#allocation3], 1
    %64 = vsyncpa [#allocation6], 1
    %65 = vsyncpa [#allocation4], 1

</llo_original>
